<compile_context>
chip_gen: v7x
topology: tpu7x:2x2x1
jax: 0.10.0
libtpu: 0.0.40
codegen_flags: <defaults>
</compile_context>

<pallas_src>
import functools

import jax
import jax.numpy as jnp
from jax import lax
from jax.experimental import pallas as pl
from jax.experimental.pallas import tpu as pltpu


def _pool_kernel(x_ref, out_ref, sum_sc, max_sc, *,
                 chunks_per_split, n_chunks, tail_valid, needs_mask,
                 ragged_split):
    """grid = (n_splits 'parallel', B 'parallel', chunks_per_split 'arbitrary').

    Streams (1, C, ts) blocks, maintains running sum / max in VMEM scratch, and
    writes per-split partial stats (1, 1, 2, C) = [sum; max] on the last chunk.
    """
    s = pl.program_id(2)
    global_chunk = pl.program_id(0) * chunks_per_split + s

    @pl.when(s == 0)
    def _init():
        sum_sc[...] = jnp.zeros_like(sum_sc)
        max_sc[...] = jnp.full_like(max_sc, -jnp.inf)

    def accumulate_full():
        x = x_ref[...].astype(jnp.float32)                          # (1, C, ts)
        sum_sc[...] += x.sum(axis=-1)
        max_sc[...] = jnp.maximum(max_sc[...], x.max(axis=-1))

    def accumulate_tail():
        # Ragged last chunk: lanes >= tail_valid are out-of-bounds garbage, so
        # both the sum mask (0) and the max mask (-inf) are required here.
        x = x_ref[...].astype(jnp.float32)                          # (1, C, ts)
        idx = lax.broadcasted_iota(jnp.int32, x.shape, dimension=2)
        valid = idx < tail_valid
        sum_sc[...] += jnp.where(valid, x, 0.0).sum(axis=-1)
        max_sc[...] = jnp.maximum(
            max_sc[...], jnp.where(valid, x, -jnp.inf).max(axis=-1))

    if needs_mask:
        # Mask only the tail chunk; interior chunks take the unmasked path.
        # (Padded grid steps with global_chunk >= n_chunks satisfy neither
        # condition and are skipped.)
        pl.when(global_chunk < n_chunks - 1)(accumulate_full)
        pl.when(global_chunk == n_chunks - 1)(accumulate_tail)
    elif ragged_split:
        # n_splits does not divide n_chunks: skip the padded (clamped) steps.
        pl.when(global_chunk < n_chunks)(accumulate_full)
    else:
        accumulate_full()

    @pl.when(s == chunks_per_split - 1)
    def _finalize():
        stats = jnp.concatenate([sum_sc[...], max_sc[...]], axis=0)  # (2, C)
        out_ref[...] = stats.reshape(out_ref.shape)


def channel_attention_3d(x, w1, w2, *, spatial_tile=None,
                         target_block_bytes=8 << 20, n_splits=None):
    """x: (B, C, D, H, W).  w1: (C//8, C).  w2: (C, C//8).  -> (B, C, 1, 1, 1)."""
    B, C, D, H, W = x.shape
    S = D * H * W
    itemsize = x.dtype.itemsize
    x_flat = x.reshape(B, C, S)          # metadata-only reshape (contiguous dims)

    # ---- per-generation VMEM budget ---------------------------------------
    try:
        vmem_cap = int(pltpu.get_tpu_info().vmem_capacity_bytes)
    except Exception:
        vmem_cap = 64 << 20              # conservative fallback (v7x per-TC)
    vmem_budget = max(vmem_cap - (16 << 20), 16 << 20)

    # ---- spatial tile: multiple of 128 lanes, ~target_block_bytes ---------
    s_round = pl.cdiv(S, 128) * 128
    if spatial_tile is not None:
        ts = max(128, (int(spatial_tile) // 128) * 128)
    else:
        tgt = min(int(target_block_bytes), (vmem_budget - (4 << 20)) // 2)
        ts = max(128, (tgt // (C * itemsize)) // 128 * 128)
    ts = min(ts, s_round)
    n_chunks = pl.cdiv(S, ts)
    needs_mask = (n_chunks * ts != S)
    tail_valid = S - (n_chunks - 1) * ts          # valid lanes in last chunk

    # ---- split the chunk axis across cores when B is too small (v7x) ------
    if n_splits is None:
        n_splits = 2 if (B == 1 and n_chunks >= 2) else 1
    n_splits = max(1, min(int(n_splits), n_chunks))
    cps = pl.cdiv(n_chunks, n_splits)             # chunks per split
    ragged_split = (n_splits * cps != n_chunks)

    block_bytes = C * ts * itemsize
    vmem_limit = int(min(vmem_budget, max(2 * block_bytes + (4 << 20), 16 << 20)))

    cost = pl.CostEstimate(
        flops=2 * B * C * S,
        transcendentals=0,
        bytes_accessed=B * C * S * itemsize + n_splits * B * 2 * C * 4,
    )

    kernel = functools.partial(
        _pool_kernel,
        chunks_per_split=cps, n_chunks=n_chunks, tail_valid=tail_valid,
        needs_mask=needs_mask, ragged_split=ragged_split,
    )

    stats = pl.pallas_call(
        kernel,
        out_shape=jax.ShapeDtypeStruct((n_splits, B, 2, C), jnp.float32),
        grid_spec=pltpu.PrefetchScalarGridSpec(
            num_scalar_prefetch=0,
            grid=(n_splits, B, cps),
            in_specs=[
                pl.BlockSpec(
                    (1, C, ts),
                    # Clamp so padded steps of a ragged split stay in bounds;
                    # the kernel skips their accumulation.
                    lambda p, b, s: (b, 0, jnp.minimum(p * cps + s, n_chunks - 1)),
                ),
            ],
            out_specs=pl.BlockSpec((1, 1, 2, C), lambda p, b, s: (p, b, 0, 0)),
            scratch_shapes=[
                pltpu.VMEM((1, C), jnp.float32),   # running sum
                pltpu.VMEM((1, C), jnp.float32),   # running max
            ],
        ),
        compiler_params=pltpu.CompilerParams(
            dimension_semantics=("parallel", "parallel", "arbitrary"),
            vmem_limit_bytes=vmem_limit,
        ),
        cost_estimate=cost,
    )(x_flat)

    # ---- tiny epilogue in XLA: combine splits, shared MLP, sigmoid --------
    total_sum = stats[:, :, 0, :].sum(axis=0)                 # (B, C)
    total_max = stats[:, :, 1, :].max(axis=0)                 # (B, C)
    avg = total_sum / jnp.float32(S)

    w1f = w1.astype(jnp.float32)                              # (C//8, C)
    w2f = w2.astype(jnp.float32)                              # (C, C//8)
    pooled = jnp.concatenate([avg, total_max], axis=0)        # (2B, C)
    h = jnp.maximum(pooled @ w1f.T, 0.0)                      # (2B, C//8)
    y = h @ w2f.T                                             # (2B, C)
    out = jax.nn.sigmoid(y[:B] + y[B:])                       # (B, C)
    return out.astype(x.dtype).reshape(B, C, 1, 1, 1)


def channel_attention_3d_ref(x, w1, w2):
    """Pure-JAX reference mirroring the PyTorch forward."""
    B, C = x.shape[:2]
    xf = x.reshape(B, C, -1).astype(jnp.float32)
    avg = xf.mean(axis=-1)
    mx = xf.max(axis=-1)

    def mlp(v):
        h = jnp.maximum(v @ w1.astype(jnp.float32).T, 0.0)
        return h @ w2.astype(jnp.float32).T

    out = jax.nn.sigmoid(mlp(avg) + mlp(mx))
    return out.reshape(B, C, 1, 1, 1).astype(x.dtype)


if __name__ == "__main__":
    key = jax.random.PRNGKey(0)
    kx, k1, k2, kx2, kx3 = jax.random.split(key, 5)

    # Test 1: small, evenly tiled shape (C divisible by 8).
    B, C, D, H, W = 2, 32, 8, 8, 8      # S = 512
    x = jax.random.normal(kx, (B, C, D, H, W), dtype=jnp.float32)
    # Conv3d 1x1x1 weights, bias=False:
    #   fc1.weight: (C//8, C, 1, 1, 1) -> (C//8, C)
    #   fc2.weight: (C, C//8, 1, 1, 1) -> (C, C//8)
    w1 = jax.random.normal(k1, (C // 8, C), dtype=jnp.float32) * (1.0 / jnp.sqrt(C))
    w2 = jax.random.normal(k2, (C, C // 8), dtype=jnp.float32) * (1.0 / jnp.sqrt(C // 8))

    out = jax.block_until_ready(channel_attention_3d(x, w1, w2))
    ref = channel_attention_3d_ref(x, w1, w2)
    assert out.shape == (B, C, 1, 1, 1), out.shape
    assert jnp.allclose(out, ref, atol=1e-5, rtol=1e-5), float(jnp.max(jnp.abs(out - ref)))

    # Test 2: ragged spatial extent + forced small tile -> multi-chunk path with
    # tail-only in-kernel masking (no host-side padding copy).
    D2, H2, W2 = 5, 7, 9                # S = 315 (not a multiple of 128)
    x2 = jax.random.normal(kx2, (B, C, D2, H2, W2), dtype=jnp.float32)
    out2 = jax.block_until_ready(channel_attention_3d(x2, w1, w2, spatial_tile=128))
    ref2 = channel_attention_3d_ref(x2, w1, w2)
    assert out2.shape == (B, C, 1, 1, 1), out2.shape
    assert jnp.allclose(out2, ref2, atol=1e-5, rtol=1e-5), float(jnp.max(jnp.abs(out2 - ref2)))

    # Test 3: B == 1 -> chunk axis split across cores; partial (sum, max) stats
    # are combined in the wrapper.  Also exercises the ragged-split (clamped +
    # skipped) padded grid steps together with the tail mask.
    x3 = jax.random.normal(kx3, (1, C, D2, H2, W2), dtype=jnp.float32)
    out3 = jax.block_until_ready(channel_attention_3d(x3, w1, w2, spatial_tile=128))
    ref3 = channel_attention_3d_ref(x3, w1, w2)
    assert out3.shape == (1, C, 1, 1, 1), out3.shape
    assert jnp.allclose(out3, ref3, atol=1e-5, rtol=1e-5), float(jnp.max(jnp.abs(out3 - ref3)))

    print("KERNEL_OK")
</pallas_src>

<mosaic_0001>
module attributes {stable_mosaic.version = 11 : i64} {
  func.func @_pool_kernel(%arg0: i32, %arg1: i32, %arg2: i32, %arg3: memref<1x32x512xf32, #tpu.memory_space<vmem>>, %arg4: memref<1x1x2x32xf32, #tpu.memory_space<vmem>>, %arg5: memref<1x32xf32, #tpu.memory_space<vmem>>, %arg6: memref<1x32xf32, #tpu.memory_space<vmem>>) attributes {dimension_semantics = [#tpu.dimension_semantics<parallel>, #tpu.dimension_semantics<parallel>, #tpu.dimension_semantics<arbitrary>], iteration_bounds = array<i64: 1, 2, 1>, scalar_prefetch = 0 : i64, scratch_operands = 2 : i64, tpu.core_type = #tpu.core_type<tc>, window_params = [{transform_indices = @transform_0, window_bounds = array<i64: 1, 32, 512>}, {transform_indices = @transform_1, window_bounds = array<i64: 1, 1, 2, 32>}]} {
    %c0_i32 = arith.constant 0 : i32
    %0 = arith.cmpi eq, %arg2, %c0_i32 : i32
    %1 = arith.extui %0 : i1 to i32
    %c0_i32_0 = arith.constant 0 : i32
    %2 = arith.cmpi ne, %1, %c0_i32_0 : i32
    scf.if %2 {
      %cst_14 = arith.constant 0.000000e+00 : f32
      %15 = vector.broadcast %cst_14 : f32 to vector<1x32xf32>
      %c0_15 = arith.constant 0 : index
      %c0_16 = arith.constant 0 : index
      %16 = vector.load %arg5[%c0_15, %c0_16] : memref<1x32xf32, #tpu.memory_space<vmem>>, vector<1x32xf32>
      tpu.vector_store %arg5[%c0_15, %c0_16], %15 {strides = array<i32>} : memref<1x32xf32, #tpu.memory_space<vmem>>, vector<1x32xf32>,
      %cst_17 = arith.constant 0xFF800000 : f32
      %17 = vector.broadcast %cst_17 : f32 to vector<1x32xf32>
      %c0_18 = arith.constant 0 : index
      %c0_19 = arith.constant 0 : index
      %18 = vector.load %arg6[%c0_18, %c0_19] : memref<1x32xf32, #tpu.memory_space<vmem>>, vector<1x32xf32>
      tpu.vector_store %arg6[%c0_18, %c0_19], %17 {strides = array<i32>} : memref<1x32xf32, #tpu.memory_space<vmem>>, vector<1x32xf32>,
    } else {
    }
    %c0 = arith.constant 0 : index
    %c0_1 = arith.constant 0 : index
    %c0_2 = arith.constant 0 : index
    %3 = vector.load %arg3[%c0, %c0_1, %c0_2] : memref<1x32x512xf32, #tpu.memory_space<vmem>>, vector<1x32x512xf32>
    %c0_3 = arith.constant 0 : index
    %c0_4 = arith.constant 0 : index
    %4 = vector.load %arg5[%c0_3, %c0_4] : memref<1x32xf32, #tpu.memory_space<vmem>>, vector<1x32xf32>
    %cst = arith.constant dense<0.000000e+00> : vector<1x32xf32>
    %5 = vector.multi_reduction <add>, %3, %cst [2] : vector<1x32x512xf32> to vector<1x32xf32>
    %6 = arith.addf %4, %5 : vector<1x32xf32>
    %c0_5 = arith.constant 0 : index
    %c0_6 = arith.constant 0 : index
    %7 = vector.load %arg5[%c0_5, %c0_6] : memref<1x32xf32, #tpu.memory_space<vmem>>, vector<1x32xf32>
    tpu.vector_store %arg5[%c0_5, %c0_6], %6 {strides = array<i32>} : memref<1x32xf32, #tpu.memory_space<vmem>>, vector<1x32xf32>,
    %c0_7 = arith.constant 0 : index
    %c0_8 = arith.constant 0 : index
    %8 = vector.load %arg6[%c0_7, %c0_8] : memref<1x32xf32, #tpu.memory_space<vmem>>, vector<1x32xf32>
    %cst_9 = arith.constant dense<0xFF800000> : vector<1x32xf32>
    %9 = vector.multi_reduction <maximumf>, %3, %cst_9 [2] : vector<1x32x512xf32> to vector<1x32xf32>
    %10 = arith.maximumf %8, %9 : vector<1x32xf32>
    %c0_10 = arith.constant 0 : index
    %c0_11 = arith.constant 0 : index
    %11 = vector.load %arg6[%c0_10, %c0_11] : memref<1x32xf32, #tpu.memory_space<vmem>>, vector<1x32xf32>
    tpu.vector_store %arg6[%c0_10, %c0_11], %10 {strides = array<i32>} : memref<1x32xf32, #tpu.memory_space<vmem>>, vector<1x32xf32>,
    %c0_i32_12 = arith.constant 0 : i32
    %12 = arith.cmpi eq, %arg2, %c0_i32_12 : i32
    %13 = arith.extui %12 : i1 to i32
    %c0_i32_13 = arith.constant 0 : i32
    %14 = arith.cmpi ne, %13, %c0_i32_13 : i32
    scf.if %14 {
      %c0_14 = arith.constant 0 : index
      %c0_15 = arith.constant 0 : index
      %15 = vector.load %arg5[%c0_14, %c0_15] : memref<1x32xf32, #tpu.memory_space<vmem>>, vector<1x32xf32>
      %c0_16 = arith.constant 0 : index
      %c0_17 = arith.constant 0 : index
      %16 = vector.load %arg6[%c0_16, %c0_17] : memref<1x32xf32, #tpu.memory_space<vmem>>, vector<1x32xf32>
      %17 = tpu.concatenate %15, %16 in 0 : vector<1x32xf32>, vector<1x32xf32> -> vector<2x32xf32>
      %18 = vector.shape_cast %17 : vector<2x32xf32> to vector<1x1x2x32xf32>
      %c0_18 = arith.constant 0 : index
      %c0_19 = arith.constant 0 : index
      %c0_20 = arith.constant 0 : index
      %c0_21 = arith.constant 0 : index
      %19 = vector.load %arg4[%c0_18, %c0_19, %c0_20, %c0_21] : memref<1x1x2x32xf32, #tpu.memory_space<vmem>>, vector<1x1x2x32xf32>
      tpu.vector_store %arg4[%c0_18, %c0_19, %c0_20, %c0_21], %18 {strides = array<i32>} : memref<1x1x2x32xf32, #tpu.memory_space<vmem>>, vector<1x1x2x32xf32>,
    } else {
    }
    return
  }
  func.func @transform_0(%arg0: i32, %arg1: i32, %arg2: i32) -> (i32, i32, i32) {
    %c1_i32 = arith.constant 1 : i32
    %0 = arith.muli %arg0, %c1_i32 : i32
    %1 = arith.addi %0, %arg2 : i32
    %c0_i32 = arith.constant 0 : i32
    %2 = arith.minsi %1, %c0_i32 : i32
    %c0_i32_0 = arith.constant 0 : i32
    %c0_i32_1 = arith.constant 0 : i32
    return %arg1, %c0_i32_0, %2 : i32, i32, i32
  }
  func.func @transform_1(%arg0: i32, %arg1: i32, %arg2: i32) -> (i32, i32, i32, i32) {
    %c0_i32 = arith.constant 0 : i32
    %c0_i32_0 = arith.constant 0 : i32
    %c0_i32_1 = arith.constant 0 : i32
    return %arg0, %arg1, %c0_i32, %c0_i32_0 : i32, i32, i32, i32
  }
}

</mosaic_0001>

<llo_original>
// kernel: tpu_custom_call.1
$region0: #{tpu_custom_call.1}
  #allocation0 [shape = 'u32[]', space=smem, size = 0x4, offset = 0x4, fixed_abs, tag = 'smem constant byte address 0x4 - core index']
  #allocation1 [shape = 'u32[144,128]{1,0:T(1,128)}', space=vmem, size = 0x12000, scoped, tag = 'internal scratch']
  #allocation2 [shape = 'f32[1,32]{1,0:T(1,128)}', space=vmem, size = 0x200, scoped, tag = 'scratch operand']
  #allocation3 [shape = 'f32[1,32]{1,0:T(1,128)}', space=vmem, size = 0x200, scoped, tag = 'scratch operand']
  %s0 = inlined_call_operand.hbm [shape: f32[2,32,512], index: 0, kind: input, shape index: {}]
  %s1 = inlined_call_operand.hbm [shape: f32[1,2,2,32], index: 1, kind: output, shape index: {}]
  %s2 = sld [smem:[#allocation0]]
  $region49: #{tpu_custom_call.1} parent=0
    _
  %s4 = ssub.s32 1, %s2
  %s5 = scalar_select 0, %s4, %s2
  $region1: #{tpu_custom_call.1} parent=0
    #allocation4 [shape = 'u8[131072]{0}', space=vmem, size = 0x20000, scoped, tag = 'input window, operand 0']
    #allocation5 [shape = 's32[2]{0}', space=sflag, size = 0x8, scoped, tag = 'scoped memory for tpu_custom_call.1']
    #allocation6 [shape = 's32[2]{0}', space=sflag, size = 0x8, scoped, tag = 'scoped memory for tpu_custom_call.1']
    #allocation7 [shape = 'u8[2048]{0}', space=vmem, size = 0x800, scoped, tag = 'output window, operand 0']
    %6 = vsyncpa [#allocation5], 0
    %s7 = scalar_lea.sflag [#allocation5], 1
    %8 = vsyncpa %s7, 0
    %9 = vsyncpa [#allocation6], 0
    %s10 = scalar_lea.sflag [#allocation6], 1
    %11 = vsyncpa %s10, 0
    loop: start=0, step=1, limit=4
    $region2: #{tpu_custom_call.1} parent=1 // loop_pre_header
      _
    $region3: #{tpu_custom_call.1} parent=1 // loop_header
      %s13 = sphi 0, %s17
      %p14 = scmp.ge.s32.totalorder %s13, 4
      %s20 = sphi 0, %s39
      %s21 = sphi 0, %s35
      %s22 = sphi 0, %s31
      %s23 = sphi 0, %s20
      %s24 = sphi 0, %s21
      %s25 = sphi 0, %s22
      %s26 = sphi 0, %s23
      %s27 = sphi 0, %s24
      %s28 = sphi 0, %s25
      %s50 = sphi 0, %s52
      %s53 = sphi 0, %s50
      %s54 = sphi 0, %s53
      %s70 = sphi 0, %s54
      %s78 = sphi 0, %s80
      %s81 = sphi 0, %s78
      %s82 = sphi 0, %s81
      %s98 = sphi 0, %s82
    $region4: #{tpu_custom_call.1} parent=1 // loop_header_branch
      %16 = sbr.rel (%p14) target = $region8
    $region5: #{tpu_custom_call.1} parent=1 // loop_body
      %s18 = ssub.s32 %s13, 1
      %s19 = ssub.s32 %s13, 2
      %s29 = sadd.s32 1, %s22
      %p30 = scmp.ge.s32.totalorder %s29, 1
      %s31 = scalar_select %p30, 0, %s29
      %s32 = sadd.s32 1, %s21
      %s33 = scalar_select %p30, %s32, %s21
      %p34 = scmp.ge.s32.totalorder %s33, 2
      %s35 = scalar_select %p34, 0, %s33
      %s36 = sadd.s32 1, %s20
      %s37 = scalar_select %p34, %s36, %s20
      %p38 = scmp.ge.s32.totalorder %s37, 1
      %s39 = scalar_select %p38, 0, %s37
      %s40 = sadd.s32 %s20, %s22
      %p41 = scmp.lt.s32.totalorder %s40, 0
      %s42 = scalar_select %p41, %s40, 0
      %s43 = sadd.s32 %s39, %s31
      %p44 = scmp.lt.s32.totalorder %s43, 0
      %s45 = scalar_select %p44, %s43, 0
      %s46 = ssub.s32 %s21, %s35
      %s47 = ssub.s32 %s42, %s45
      %s48 = sor.u32 %s46, %s47
      %p49 = scmp.eq.s32.totalorder %s48, 0
      %s51 = sadd.s32 %s50, 1
      %s52 = scalar_select %p49, %s50, %s51
      %p55 = pneg %p49
      %p56 = scmp.eq.s32.totalorder %s13, 1
      %p57 = por %p55, %p56
      %p58 = scmp.ne.s32.totalorder %s50, %s53
      %p59 = scmp.eq.s32.totalorder %s13, 0
      %p60 = por %p58, %p59
      %p61 = scmp.ne.s32.totalorder %s50, %s53
      %p62 = scmp.eq.s32.totalorder %s18, 1
      %p63 = por %p61, %p62
      %p64 = scmp.ne.s32.totalorder %s53, %s54
      %p65 = scmp.eq.s32.totalorder %s18, 0
      %p66 = por %p64, %p65
      %p67 = scmp.ne.s32.totalorder %s53, %s54
      %p68 = scmp.eq.s32.totalorder %s19, 1
      %p69 = por %p67, %p68
      %p71 = scmp.ne.s32.totalorder %s54, %s70
      %p72 = scmp.eq.s32.totalorder %s19, 0
      %p73 = por %p71, %p72
      %s74 = ssub.s32 %s20, %s39
      %s75 = ssub.s32 %s21, %s35
      %s76 = sor.u32 %s74, %s75
      %p77 = scmp.eq.s32.totalorder %s76, 0
      %s79 = sadd.s32 %s78, 1
      %s80 = scalar_select %p77, %s78, %s79
      %p83 = pneg %p77
      %p84 = scmp.eq.s32.totalorder %s13, 1
      %p85 = por %p83, %p84
      %p86 = scmp.ne.s32.totalorder %s78, %s81
      %p87 = scmp.eq.s32.totalorder %s13, 0
      %p88 = por %p86, %p87
      %p89 = scmp.ne.s32.totalorder %s78, %s81
      %p90 = scmp.eq.s32.totalorder %s18, 1
      %p91 = por %p89, %p90
      %p92 = scmp.ne.s32.totalorder %s81, %s82
      %p93 = scmp.eq.s32.totalorder %s18, 0
      %p94 = por %p92, %p93
      %p95 = scmp.ne.s32.totalorder %s81, %s82
      %p96 = scmp.eq.s32.totalorder %s19, 1
      %p97 = por %p95, %p96
      %p99 = scmp.ne.s32.totalorder %s82, %s98
      %p100 = scmp.eq.s32.totalorder %s19, 0
      %p101 = por %p99, %p100
      %p102 = scmp.le.s32.totalorder 1, %s13
      %p103 = scmp.lt.s32.totalorder %s13, 3
      %p104 = pnand %p102, %p103
      %p105 = pneg %p104
      // Predicated region
      $region9: #{tpu_custom_call.1} parent=5 // pred_check
        _
      $region10: #{tpu_custom_call.1} parent=5 // pred_check_branch
        %107 = sbr.rel (%p104) target = $region12
      $region11: #{tpu_custom_call.1} parent=5 // pred_region
        %s108 = ssub.s32 %s13, 1
      $region12: #{tpu_custom_call.1} parent=5 // pred_fallthru
        _
      %p109 = scmp.lt.s32.totalorder %s13, 2
      // Predicated region
      $region13: #{tpu_custom_call.1} parent=5 // pred_check
        %p110 = pneg %p109
      $region14: #{tpu_custom_call.1} parent=5 // pred_check_branch
        %112 = sbr.rel (%p110) target = $region16
      $region15: #{tpu_custom_call.1} parent=5 // pred_region
        // Predicated region
        $region17: #{tpu_custom_call.1} parent=15 // pred_check
          %p113 = pneg %p60
        $region18: #{tpu_custom_call.1} parent=15 // pred_check_branch
          %115 = sbr.rel (%p113) target = $region20
        $region19: #{tpu_custom_call.1} parent=15 // pred_region
          %s116 = sand.u32 %s50, 1
          %s117 = scalar_lea.sflag [#allocation5], %s116
          %s118 = sand.u32 %s50, 1
          %s119 = smul.addr %s118, 128
          %s120 = scalar_lea.vmem [#allocation4], %s119
          %s121 = sadd.s32 %s20, %s22
          %p122 = scmp.lt.s32.totalorder %s121, 0
          %s123 = scalar_select %p122, %s121, 0
          %s124 = smul.u32 4, %s123
          %s126 = ssub.s32 2048, 2048
          %127 = vsyncadd %s117, %s126
          %s128 = smul.addr %s21, 16
          %s129 = sadd.s32 %s124, %s128
          %s130 = smul.addr %s129, 128
          %s131 = scalar_lea.hbm %s0, %s130
          %s132 = sshll.u32 %s120, 4
          %s133 = int_to_ptr.vmem [resolvable:$true] %s132
          %138 = dma.hbm_to_vmem [thread:$0]  %s131, 2048, %s133, %s117, 512, 512, 32
        $region20: #{tpu_custom_call.1} parent=15 // pred_fallthru
          _
      $region16: #{tpu_custom_call.1} parent=5 // pred_fallthru
        _
      %p139 = scmp.le.s32.totalorder 1, %s13
      %p140 = scmp.lt.s32.totalorder %s13, 3
      %p141 = pnand %p139, %p140
      %p142 = pneg %p141
      // Predicated region
      $region21: #{tpu_custom_call.1} parent=5 // pred_check
        _
      $region22: #{tpu_custom_call.1} parent=5 // pred_check_branch
        %144 = sbr.rel (%p141) target = $region24
      $region23: #{tpu_custom_call.1} parent=5 // pred_region
        %s145 = ssub.s32 %s13, 1
        %s146 = sand.u32 %s53, 1
        %s147 = scalar_lea.sflag [#allocation5], %s146
        %s148 = sand.u32 %s53, 1
        %s149 = smul.addr %s148, 128
        %s150 = scalar_lea.vmem [#allocation4], %s149
        // Predicated region
        $region25: #{tpu_custom_call.1} parent=23 // pred_check
          %p151 = pneg %p66
        $region26: #{tpu_custom_call.1} parent=23 // pred_check_branch
          %153 = sbr.rel (%p151) target = $region28
        $region27: #{tpu_custom_call.1} parent=23 // pred_region
          %154 = dma.done %s147, 2048
        $region28: #{tpu_custom_call.1} parent=23 // pred_fallthru
          _
        %s155 = sand.u32 %s53, 1
        %s156 = scalar_lea.sflag [#allocation5], %s155
        %s157 = sand.u32 %s53, 1
        %s158 = smul.addr %s157, 128
        %s159 = scalar_lea.vmem [#allocation4], %s158
        %p160 = pneg %p66
        %p161 = pneg %p63
        %p162 = pneg %p94
        %p163 = pneg %p91
        %s164 = sand.u32 %s81, 1
        %s165 = scalar_lea.sflag [#allocation6], %s164
        %s166 = sand.u32 %s81, 1
        %s167 = smul.addr %s166, 2
        %s168 = scalar_lea.vmem [#allocation7], %s167
        %s169 = sadd.s32 %s23, %s25
        %p170 = scmp.lt.s32.totalorder %s169, 0
        %s171 = scalar_select %p170, %s169, 0
        %s172 = smul.u32 4, %s171
        %p173 = scmp.eq.s32.totalorder %s25, 0
        // Predicated region
        $region29: #{tpu_custom_call.1} parent=23 // pred_check
          %p174 = pneg %p173
        $region30: #{tpu_custom_call.1} parent=23 // pred_check_branch
          %176 = sbr.rel (%p174) target = $region32
        $region31: #{tpu_custom_call.1} parent=23 // pred_region
          %vm177 = vcmask 253952
          %178 = vst.msk [vmem:[#allocation2] sm:$0x1] %vm177, 0.0
          %179 = vst.msk [vmem:[#allocation3] sm:$0x1] %vm177, -inf
        $region32: #{tpu_custom_call.1} parent=23 // pred_fallthru
          _
        %v180 = vld [vmem:[%s150] sm:$0xff]
        %v181 = vld [vmem:[%s150 + $0x8] sm:$0xff]
        %v182 = vld [vmem:[%s150 + $0x10] sm:$0xff]
        %v183 = vld [vmem:[%s150 + $0x18] sm:$0xff]
        %v184 = vld [vmem:[%s150 + $0x20] sm:$0xff]
        %v185 = vld [vmem:[%s150 + $0x28] sm:$0xff]
        %v186 = vld [vmem:[%s150 + $0x30] sm:$0xff]
        %v187 = vld [vmem:[%s150 + $0x38] sm:$0xff]
        %v188 = vld [vmem:[%s150 + $0x40] sm:$0xff]
        %v189 = vld [vmem:[%s150 + $0x48] sm:$0xff]
        %v190 = vld [vmem:[%s150 + $0x50] sm:$0xff]
        %v191 = vld [vmem:[%s150 + $0x58] sm:$0xff]
        %v192 = vld [vmem:[%s150 + $0x60] sm:$0xff]
        %v193 = vld [vmem:[%s150 + $0x68] sm:$0xff]
        %v194 = vld [vmem:[%s150 + $0x70] sm:$0xff]
        %v195 = vld [vmem:[%s150 + $0x78] sm:$0xff]
        %v196 = vld [vmem:[#allocation2] sm:$0x1]
        %v197 = vadd.f32 %v180, %v181
        %v198 = vadd.f32 %v197, %v182
        %v199 = vadd.f32 %v198, %v183
        %200 = vadd.xlane.f32.xlu0 %v199
        %v201 = vpop.xlane.xlu0 %200
        %v202 = vadd.f32 %v184, %v185
        %v203 = vadd.f32 %v202, %v186
        %v204 = vadd.f32 %v203, %v187
        %205 = vadd.xlane.f32.xlu0 %v204
        %v206 = vpop.xlane.xlu0 %205
        %v207 = vadd.f32 %v188, %v189
        %v208 = vadd.f32 %v207, %v190
        %v209 = vadd.f32 %v208, %v191
        %210 = vadd.xlane.f32.xlu0 %v209
        %v211 = vpop.xlane.xlu0 %210
        %v212 = vadd.f32 %v192, %v193
        %v213 = vadd.f32 %v212, %v194
        %v214 = vadd.f32 %v213, %v195
        %215 = vadd.xlane.f32.xlu0 %v214
        %v216 = vpop.xlane.xlu0 %215
        %v221 = vlaneseq
        %v222 = vshrl.u32 %v221, 7
        %v223 = vsub.s32 0, %v222
        %v224 = vrot.slane %v201, %v223
        %v225 = vlaneseq
        %v226 = vshrl.u32 %v225, 7
        %v227 = vsub.s32 1, %v226
        %v228 = vrot.slane %v201, %v227
        %v229 = vlaneseq
        %v230 = vshrl.u32 %v229, 7
        %v231 = vsub.s32 2, %v230
        %v232 = vrot.slane %v201, %v231
        %v233 = vlaneseq
        %v234 = vshrl.u32 %v233, 7
        %v235 = vsub.s32 3, %v234
        %v236 = vrot.slane %v201, %v235
        %v237 = vlaneseq
        %v238 = vshrl.u32 %v237, 7
        %v239 = vsub.s32 4, %v238
        %v240 = vrot.slane %v201, %v239
        %v241 = vlaneseq
        %v242 = vshrl.u32 %v241, 7
        %v243 = vsub.s32 5, %v242
        %v244 = vrot.slane %v201, %v243
        %v245 = vlaneseq
        %v246 = vshrl.u32 %v245, 7
        %v247 = vsub.s32 6, %v246
        %v248 = vrot.slane %v201, %v247
        %v249 = vlaneseq
        %v250 = vshrl.u32 %v249, 7
        %v251 = vsub.s32 7, %v250
        %v252 = vrot.slane %v201, %v251
        %v253 = vlaneseq
        %v254 = vshrl.u32 %v253, 7
        %v255 = vsub.s32 0, %v254
        %v256 = vrot.slane %v206, %v255
        %v257 = vlaneseq
        %v258 = vshrl.u32 %v257, 7
        %v259 = vsub.s32 1, %v258
        %v260 = vrot.slane %v206, %v259
        %v261 = vlaneseq
        %v262 = vshrl.u32 %v261, 7
        %v263 = vsub.s32 2, %v262
        %v264 = vrot.slane %v206, %v263
        %v265 = vlaneseq
        %v266 = vshrl.u32 %v265, 7
        %v267 = vsub.s32 3, %v266
        %v268 = vrot.slane %v206, %v267
        %v269 = vlaneseq
        %v270 = vshrl.u32 %v269, 7
        %v271 = vsub.s32 4, %v270
        %v272 = vrot.slane %v206, %v271
        %v273 = vlaneseq
        %v274 = vshrl.u32 %v273, 7
        %v275 = vsub.s32 5, %v274
        %v276 = vrot.slane %v206, %v275
        %v277 = vlaneseq
        %v278 = vshrl.u32 %v277, 7
        %v279 = vsub.s32 6, %v278
        %v280 = vrot.slane %v206, %v279
        %v281 = vlaneseq
        %v282 = vshrl.u32 %v281, 7
        %v283 = vsub.s32 7, %v282
        %v284 = vrot.slane %v206, %v283
        %v285 = vlaneseq
        %v286 = vshrl.u32 %v285, 7
        %v287 = vsub.s32 0, %v286
        %v288 = vrot.slane %v211, %v287
        %v289 = vlaneseq
        %v290 = vshrl.u32 %v289, 7
        %v291 = vsub.s32 1, %v290
        %v292 = vrot.slane %v211, %v291
        %v293 = vlaneseq
        %v294 = vshrl.u32 %v293, 7
        %v295 = vsub.s32 2, %v294
        %v296 = vrot.slane %v211, %v295
        %v297 = vlaneseq
        %v298 = vshrl.u32 %v297, 7
        %v299 = vsub.s32 3, %v298
        %v300 = vrot.slane %v211, %v299
        %v301 = vlaneseq
        %v302 = vshrl.u32 %v301, 7
        %v303 = vsub.s32 4, %v302
        %v304 = vrot.slane %v211, %v303
        %v305 = vlaneseq
        %v306 = vshrl.u32 %v305, 7
        %v307 = vsub.s32 5, %v306
        %v308 = vrot.slane %v211, %v307
        %v309 = vlaneseq
        %v310 = vshrl.u32 %v309, 7
        %v311 = vsub.s32 6, %v310
        %v312 = vrot.slane %v211, %v311
        %v313 = vlaneseq
        %v314 = vshrl.u32 %v313, 7
        %v315 = vsub.s32 7, %v314
        %v316 = vrot.slane %v211, %v315
        %v317 = vlaneseq
        %v318 = vshrl.u32 %v317, 7
        %v319 = vsub.s32 0, %v318
        %v320 = vrot.slane %v216, %v319
        %v321 = vlaneseq
        %v322 = vshrl.u32 %v321, 7
        %v323 = vsub.s32 1, %v322
        %v324 = vrot.slane %v216, %v323
        %v325 = vlaneseq
        %v326 = vshrl.u32 %v325, 7
        %v327 = vsub.s32 2, %v326
        %v328 = vrot.slane %v216, %v327
        %v329 = vlaneseq
        %v330 = vshrl.u32 %v329, 7
        %v331 = vsub.s32 3, %v330
        %v332 = vrot.slane %v216, %v331
        %v333 = vlaneseq
        %v334 = vshrl.u32 %v333, 7
        %v335 = vsub.s32 4, %v334
        %v336 = vrot.slane %v216, %v335
        %v337 = vlaneseq
        %v338 = vshrl.u32 %v337, 7
        %v339 = vsub.s32 5, %v338
        %v340 = vrot.slane %v216, %v339
        %v341 = vlaneseq
        %v342 = vshrl.u32 %v341, 7
        %v343 = vsub.s32 6, %v342
        %v344 = vrot.slane %v216, %v343
        %v345 = vlaneseq
        %v346 = vshrl.u32 %v345, 7
        %v347 = vsub.s32 7, %v346
        %v348 = vrot.slane %v216, %v347
        %v349 = vcombine.low %v224, %v228
        %v350 = vcombine.low %v232, %v236
        %v351 = vcombine.low %v240, %v244
        %v352 = vcombine.low %v248, %v252
        %v354 = vunpack.c.l.s4 1966171168
        %v355 = vunpack.c.0.s8 %v354
        %v356 = vlaneseq
        %v357 = vshrl.u32 %v356, 7
        %v358 = vsub.s32 %v355, %v357
        %v359 = vrot.slane %v349, %v358
        %v361 = vunpack.c.l.s4 1966171168
        %v362 = vunpack.c.0.s8 %v361
        %v363 = vlaneseq
        %v364 = vshrl.u32 %v363, 7
        %v365 = vsub.s32 %v362, %v364
        %v366 = vrot.slane %v350, %v365
        %v368 = vunpack.c.l.s4 1966171168
        %v369 = vunpack.c.0.s8 %v368
        %v370 = vlaneseq
        %v371 = vshrl.u32 %v370, 7
        %v372 = vsub.s32 %v369, %v371
        %v373 = vrot.slane %v351, %v372
        %v375 = vunpack.c.l.s4 1966171168
        %v376 = vunpack.c.0.s8 %v375
        %v377 = vlaneseq
        %v378 = vshrl.u32 %v377, 7
        %v379 = vsub.s32 %v376, %v378
        %v380 = vrot.slane %v352, %v379
        %v381 = vcombine.low %v359, %v366
        %v382 = vcombine.low %v373, %v380
        %v384 = vunpack.c.l.s4 1966171168
        %v385 = vunpack.c.0.s8 %v384
        %v386 = vlaneseq
        %v387 = vshrl.u32 %v386, 7
        %v388 = vsub.s32 %v385, %v387
        %v389 = vrot.slane %v381, %v388
        %v391 = vunpack.c.l.s4 1966171168
        %v392 = vunpack.c.0.s8 %v391
        %v393 = vlaneseq
        %v394 = vshrl.u32 %v393, 7
        %v395 = vsub.s32 %v392, %v394
        %v396 = vrot.slane %v382, %v395
        %v397 = vcombine.low %v389, %v396
        %v398 = vcombine.low %v256, %v260
        %v399 = vcombine.low %v264, %v268
        %v400 = vcombine.low %v272, %v276
        %v401 = vcombine.low %v280, %v284
        %v403 = vunpack.c.l.s4 1966171168
        %v404 = vunpack.c.0.s8 %v403
        %v405 = vlaneseq
        %v406 = vshrl.u32 %v405, 7
        %v407 = vsub.s32 %v404, %v406
        %v408 = vrot.slane %v398, %v407
        %v410 = vunpack.c.l.s4 1966171168
        %v411 = vunpack.c.0.s8 %v410
        %v412 = vlaneseq
        %v413 = vshrl.u32 %v412, 7
        %v414 = vsub.s32 %v411, %v413
        %v415 = vrot.slane %v399, %v414
        %v417 = vunpack.c.l.s4 1966171168
        %v418 = vunpack.c.0.s8 %v417
        %v419 = vlaneseq
        %v420 = vshrl.u32 %v419, 7
        %v421 = vsub.s32 %v418, %v420
        %v422 = vrot.slane %v400, %v421
        %v424 = vunpack.c.l.s4 1966171168
        %v425 = vunpack.c.0.s8 %v424
        %v426 = vlaneseq
        %v427 = vshrl.u32 %v426, 7
        %v428 = vsub.s32 %v425, %v427
        %v429 = vrot.slane %v401, %v428
        %v430 = vcombine.low %v408, %v415
        %v431 = vcombine.low %v422, %v429
        %v433 = vunpack.c.l.s4 1966171168
        %v434 = vunpack.c.0.s8 %v433
        %v435 = vlaneseq
        %v436 = vshrl.u32 %v435, 7
        %v437 = vsub.s32 %v434, %v436
        %v438 = vrot.slane %v430, %v437
        %v440 = vunpack.c.l.s4 1966171168
        %v441 = vunpack.c.0.s8 %v440
        %v442 = vlaneseq
        %v443 = vshrl.u32 %v442, 7
        %v444 = vsub.s32 %v441, %v443
        %v445 = vrot.slane %v431, %v444
        %v446 = vcombine.low %v438, %v445
        %v447 = vcombine.low %v288, %v292
        %v448 = vcombine.low %v296, %v300
        %v449 = vcombine.low %v304, %v308
        %v450 = vcombine.low %v312, %v316
        %v452 = vunpack.c.l.s4 1966171168
        %v453 = vunpack.c.0.s8 %v452
        %v454 = vlaneseq
        %v455 = vshrl.u32 %v454, 7
        %v456 = vsub.s32 %v453, %v455
        %v457 = vrot.slane %v447, %v456
        %v459 = vunpack.c.l.s4 1966171168
        %v460 = vunpack.c.0.s8 %v459
        %v461 = vlaneseq
        %v462 = vshrl.u32 %v461, 7
        %v463 = vsub.s32 %v460, %v462
        %v464 = vrot.slane %v448, %v463
        %v466 = vunpack.c.l.s4 1966171168
        %v467 = vunpack.c.0.s8 %v466
        %v468 = vlaneseq
        %v469 = vshrl.u32 %v468, 7
        %v470 = vsub.s32 %v467, %v469
        %v471 = vrot.slane %v449, %v470
        %v473 = vunpack.c.l.s4 1966171168
        %v474 = vunpack.c.0.s8 %v473
        %v475 = vlaneseq
        %v476 = vshrl.u32 %v475, 7
        %v477 = vsub.s32 %v474, %v476
        %v478 = vrot.slane %v450, %v477
        %v479 = vcombine.low %v457, %v464
        %v480 = vcombine.low %v471, %v478
        %v482 = vunpack.c.l.s4 1966171168
        %v483 = vunpack.c.0.s8 %v482
        %v484 = vlaneseq
        %v485 = vshrl.u32 %v484, 7
        %v486 = vsub.s32 %v483, %v485
        %v487 = vrot.slane %v479, %v486
        %v489 = vunpack.c.l.s4 1966171168
        %v490 = vunpack.c.0.s8 %v489
        %v491 = vlaneseq
        %v492 = vshrl.u32 %v491, 7
        %v493 = vsub.s32 %v490, %v492
        %v494 = vrot.slane %v480, %v493
        %v495 = vcombine.low %v487, %v494
        %v496 = vcombine.low %v320, %v324
        %v497 = vcombine.low %v328, %v332
        %v498 = vcombine.low %v336, %v340
        %v499 = vcombine.low %v344, %v348
        %v501 = vunpack.c.l.s4 1966171168
        %v502 = vunpack.c.0.s8 %v501
        %v503 = vlaneseq
        %v504 = vshrl.u32 %v503, 7
        %v505 = vsub.s32 %v502, %v504
        %v506 = vrot.slane %v496, %v505
        %v508 = vunpack.c.l.s4 1966171168
        %v509 = vunpack.c.0.s8 %v508
        %v510 = vlaneseq
        %v511 = vshrl.u32 %v510, 7
        %v512 = vsub.s32 %v509, %v511
        %v513 = vrot.slane %v497, %v512
        %v515 = vunpack.c.l.s4 1966171168
        %v516 = vunpack.c.0.s8 %v515
        %v517 = vlaneseq
        %v518 = vshrl.u32 %v517, 7
        %v519 = vsub.s32 %v516, %v518
        %v520 = vrot.slane %v498, %v519
        %v522 = vunpack.c.l.s4 1966171168
        %v523 = vunpack.c.0.s8 %v522
        %v524 = vlaneseq
        %v525 = vshrl.u32 %v524, 7
        %v526 = vsub.s32 %v523, %v525
        %v527 = vrot.slane %v499, %v526
        %v528 = vcombine.low %v506, %v513
        %v529 = vcombine.low %v520, %v527
        %v531 = vunpack.c.l.s4 1966171168
        %v532 = vunpack.c.0.s8 %v531
        %v533 = vlaneseq
        %v534 = vshrl.u32 %v533, 7
        %v535 = vsub.s32 %v532, %v534
        %v536 = vrot.slane %v528, %v535
        %v538 = vunpack.c.l.s4 1966171168
        %v539 = vunpack.c.0.s8 %v538
        %v540 = vlaneseq
        %v541 = vshrl.u32 %v540, 7
        %v542 = vsub.s32 %v539, %v541
        %v543 = vrot.slane %v529, %v542
        %v544 = vcombine.low %v536, %v543
        %545 = vset.pattern.permute.xlu0 0
        %546 = vperm.xlu0 %545, %v397
        %v547 = vpop.permute.xlu0 %546
        %548 = vset.pattern.permute.xlu0 0
        %549 = vperm.xlu0 %548, %v446
        %v550 = vpop.permute.xlu0 %549
        %551 = vset.pattern.permute.xlu0 0
        %552 = vperm.xlu0 %551, %v495
        %v553 = vpop.permute.xlu0 %552
        %554 = vset.pattern.permute.xlu0 0
        %555 = vperm.xlu0 %554, %v544
        %v556 = vpop.permute.xlu0 %555
        %v557 = vlaneseq
        %v558 = vand.u32 %v557, 127
        %v559 = vlaneseq
        %v560 = vshrl.u32 %v559, 7
        %v561 = vsub.s32 %v558, %v560
        %v562 = vrot.slane %v547, %v561
        %v563 = vadd.s32 %v558, 4294967288
        %v564 = vlaneseq
        %v565 = vshrl.u32 %v564, 7
        %v566 = vsub.s32 %v563, %v565
        %v567 = vrot.slane %v550, %v566
        %vm568 = vcmask 130112
        %v569 = vsel %vm568, %v567, %v562
        %v570 = vadd.s32 %v558, 4294967280
        %v571 = vlaneseq
        %v572 = vshrl.u32 %v571, 7
        %v573 = vsub.s32 %v570, %v572
        %v574 = vrot.slane %v553, %v573
        %vm575 = vcmask 195712
        %v576 = vsel %vm575, %v574, %v569
        %v577 = vadd.s32 %v558, 4294967272
        %v578 = vlaneseq
        %v579 = vshrl.u32 %v578, 7
        %v580 = vsub.s32 %v577, %v579
        %v581 = vrot.slane %v556, %v580
        %vm582 = vcmask 261312
        %v583 = vsel %vm582, %v581, %v576
        %v585 = vunpack.c.l.s4 1966171168
        %v586 = vunpack.c.0.s8 %v585
        %v587 = vlaneseq
        %v588 = vshrl.u32 %v587, 7
        %v589 = vsub.s32 %v586, %v588
        %v590 = vrot.slane %v583, %v589
        %v592 = vunpack.c.l.s4 1966171168
        %v593 = vunpack.c.0.s8 %v592
        %v594 = vlaneseq
        %v595 = vshrl.u32 %v594, 7
        %v596 = vsub.s32 %v593, %v595
        %v597 = vrot.slane %v590, %v596
        %v599 = vadd.f32 %v196, %v597
        %vm600 = vcmask 253952
        %601 = vst.msk [vmem:[#allocation2] sm:$0x1] %vm600, %v599
        %v602 = vld [vmem:[#allocation3] sm:$0x1]
        %v603 = vmax.f32 %v180, %v181
        %v604 = vmax.f32 %v603, %v182
        %v605 = vmax.f32 %v604, %v183
        %606 = vmax.xlane.f32.xlu0 %v605
        %v607 = vpop.xlane.xlu0 %606
        %v608 = vmax.f32 %v184, %v185
        %v609 = vmax.f32 %v608, %v186
        %v610 = vmax.f32 %v609, %v187
        %611 = vmax.xlane.f32.xlu0 %v610
        %v612 = vpop.xlane.xlu0 %611
        %v613 = vmax.f32 %v188, %v189
        %v614 = vmax.f32 %v613, %v190
        %v615 = vmax.f32 %v614, %v191
        %616 = vmax.xlane.f32.xlu0 %v615
        %v617 = vpop.xlane.xlu0 %616
        %v618 = vmax.f32 %v192, %v193
        %v619 = vmax.f32 %v618, %v194
        %v620 = vmax.f32 %v619, %v195
        %621 = vmax.xlane.f32.xlu0 %v620
        %v622 = vpop.xlane.xlu0 %621
        %v627 = vlaneseq
        %v628 = vshrl.u32 %v627, 7
        %v629 = vsub.s32 0, %v628
        %v630 = vrot.slane %v607, %v629
        %v631 = vlaneseq
        %v632 = vshrl.u32 %v631, 7
        %v633 = vsub.s32 1, %v632
        %v634 = vrot.slane %v607, %v633
        %v635 = vlaneseq
        %v636 = vshrl.u32 %v635, 7
        %v637 = vsub.s32 2, %v636
        %v638 = vrot.slane %v607, %v637
        %v639 = vlaneseq
        %v640 = vshrl.u32 %v639, 7
        %v641 = vsub.s32 3, %v640
        %v642 = vrot.slane %v607, %v641
        %v643 = vlaneseq
        %v644 = vshrl.u32 %v643, 7
        %v645 = vsub.s32 4, %v644
        %v646 = vrot.slane %v607, %v645
        %v647 = vlaneseq
        %v648 = vshrl.u32 %v647, 7
        %v649 = vsub.s32 5, %v648
        %v650 = vrot.slane %v607, %v649
        %v651 = vlaneseq
        %v652 = vshrl.u32 %v651, 7
        %v653 = vsub.s32 6, %v652
        %v654 = vrot.slane %v607, %v653
        %v655 = vlaneseq
        %v656 = vshrl.u32 %v655, 7
        %v657 = vsub.s32 7, %v656
        %v658 = vrot.slane %v607, %v657
        %v659 = vlaneseq
        %v660 = vshrl.u32 %v659, 7
        %v661 = vsub.s32 0, %v660
        %v662 = vrot.slane %v612, %v661
        %v663 = vlaneseq
        %v664 = vshrl.u32 %v663, 7
        %v665 = vsub.s32 1, %v664
        %v666 = vrot.slane %v612, %v665
        %v667 = vlaneseq
        %v668 = vshrl.u32 %v667, 7
        %v669 = vsub.s32 2, %v668
        %v670 = vrot.slane %v612, %v669
        %v671 = vlaneseq
        %v672 = vshrl.u32 %v671, 7
        %v673 = vsub.s32 3, %v672
        %v674 = vrot.slane %v612, %v673
        %v675 = vlaneseq
        %v676 = vshrl.u32 %v675, 7
        %v677 = vsub.s32 4, %v676
        %v678 = vrot.slane %v612, %v677
        %v679 = vlaneseq
        %v680 = vshrl.u32 %v679, 7
        %v681 = vsub.s32 5, %v680
        %v682 = vrot.slane %v612, %v681
        %v683 = vlaneseq
        %v684 = vshrl.u32 %v683, 7
        %v685 = vsub.s32 6, %v684
        %v686 = vrot.slane %v612, %v685
        %v687 = vlaneseq
        %v688 = vshrl.u32 %v687, 7
        %v689 = vsub.s32 7, %v688
        %v690 = vrot.slane %v612, %v689
        %v691 = vlaneseq
        %v692 = vshrl.u32 %v691, 7
        %v693 = vsub.s32 0, %v692
        %v694 = vrot.slane %v617, %v693
        %v695 = vlaneseq
        %v696 = vshrl.u32 %v695, 7
        %v697 = vsub.s32 1, %v696
        %v698 = vrot.slane %v617, %v697
        %v699 = vlaneseq
        %v700 = vshrl.u32 %v699, 7
        %v701 = vsub.s32 2, %v700
        %v702 = vrot.slane %v617, %v701
        %v703 = vlaneseq
        %v704 = vshrl.u32 %v703, 7
        %v705 = vsub.s32 3, %v704
        %v706 = vrot.slane %v617, %v705
        %v707 = vlaneseq
        %v708 = vshrl.u32 %v707, 7
        %v709 = vsub.s32 4, %v708
        %v710 = vrot.slane %v617, %v709
        %v711 = vlaneseq
        %v712 = vshrl.u32 %v711, 7
        %v713 = vsub.s32 5, %v712
        %v714 = vrot.slane %v617, %v713
        %v715 = vlaneseq
        %v716 = vshrl.u32 %v715, 7
        %v717 = vsub.s32 6, %v716
        %v718 = vrot.slane %v617, %v717
        %v719 = vlaneseq
        %v720 = vshrl.u32 %v719, 7
        %v721 = vsub.s32 7, %v720
        %v722 = vrot.slane %v617, %v721
        %v723 = vlaneseq
        %v724 = vshrl.u32 %v723, 7
        %v725 = vsub.s32 0, %v724
        %v726 = vrot.slane %v622, %v725
        %v727 = vlaneseq
        %v728 = vshrl.u32 %v727, 7
        %v729 = vsub.s32 1, %v728
        %v730 = vrot.slane %v622, %v729
        %v731 = vlaneseq
        %v732 = vshrl.u32 %v731, 7
        %v733 = vsub.s32 2, %v732
        %v734 = vrot.slane %v622, %v733
        %v735 = vlaneseq
        %v736 = vshrl.u32 %v735, 7
        %v737 = vsub.s32 3, %v736
        %v738 = vrot.slane %v622, %v737
        %v739 = vlaneseq
        %v740 = vshrl.u32 %v739, 7
        %v741 = vsub.s32 4, %v740
        %v742 = vrot.slane %v622, %v741
        %v743 = vlaneseq
        %v744 = vshrl.u32 %v743, 7
        %v745 = vsub.s32 5, %v744
        %v746 = vrot.slane %v622, %v745
        %v747 = vlaneseq
        %v748 = vshrl.u32 %v747, 7
        %v749 = vsub.s32 6, %v748
        %v750 = vrot.slane %v622, %v749
        %v751 = vlaneseq
        %v752 = vshrl.u32 %v751, 7
        %v753 = vsub.s32 7, %v752
        %v754 = vrot.slane %v622, %v753
        %v755 = vcombine.low %v630, %v634
        %v756 = vcombine.low %v638, %v642
        %v757 = vcombine.low %v646, %v650
        %v758 = vcombine.low %v654, %v658
        %v760 = vunpack.c.l.s4 1966171168
        %v761 = vunpack.c.0.s8 %v760
        %v762 = vlaneseq
        %v763 = vshrl.u32 %v762, 7
        %v764 = vsub.s32 %v761, %v763
        %v765 = vrot.slane %v755, %v764
        %v767 = vunpack.c.l.s4 1966171168
        %v768 = vunpack.c.0.s8 %v767
        %v769 = vlaneseq
        %v770 = vshrl.u32 %v769, 7
        %v771 = vsub.s32 %v768, %v770
        %v772 = vrot.slane %v756, %v771
        %v774 = vunpack.c.l.s4 1966171168
        %v775 = vunpack.c.0.s8 %v774
        %v776 = vlaneseq
        %v777 = vshrl.u32 %v776, 7
        %v778 = vsub.s32 %v775, %v777
        %v779 = vrot.slane %v757, %v778
        %v781 = vunpack.c.l.s4 1966171168
        %v782 = vunpack.c.0.s8 %v781
        %v783 = vlaneseq
        %v784 = vshrl.u32 %v783, 7
        %v785 = vsub.s32 %v782, %v784
        %v786 = vrot.slane %v758, %v785
        %v787 = vcombine.low %v765, %v772
        %v788 = vcombine.low %v779, %v786
        %v790 = vunpack.c.l.s4 1966171168
        %v791 = vunpack.c.0.s8 %v790
        %v792 = vlaneseq
        %v793 = vshrl.u32 %v792, 7
        %v794 = vsub.s32 %v791, %v793
        %v795 = vrot.slane %v787, %v794
        %v797 = vunpack.c.l.s4 1966171168
        %v798 = vunpack.c.0.s8 %v797
        %v799 = vlaneseq
        %v800 = vshrl.u32 %v799, 7
        %v801 = vsub.s32 %v798, %v800
        %v802 = vrot.slane %v788, %v801
        %v803 = vcombine.low %v795, %v802
        %v804 = vcombine.low %v662, %v666
        %v805 = vcombine.low %v670, %v674
        %v806 = vcombine.low %v678, %v682
        %v807 = vcombine.low %v686, %v690
        %v809 = vunpack.c.l.s4 1966171168
        %v810 = vunpack.c.0.s8 %v809
        %v811 = vlaneseq
        %v812 = vshrl.u32 %v811, 7
        %v813 = vsub.s32 %v810, %v812
        %v814 = vrot.slane %v804, %v813
        %v816 = vunpack.c.l.s4 1966171168
        %v817 = vunpack.c.0.s8 %v816
        %v818 = vlaneseq
        %v819 = vshrl.u32 %v818, 7
        %v820 = vsub.s32 %v817, %v819
        %v821 = vrot.slane %v805, %v820
        %v823 = vunpack.c.l.s4 1966171168
        %v824 = vunpack.c.0.s8 %v823
        %v825 = vlaneseq
        %v826 = vshrl.u32 %v825, 7
        %v827 = vsub.s32 %v824, %v826
        %v828 = vrot.slane %v806, %v827
        %v830 = vunpack.c.l.s4 1966171168
        %v831 = vunpack.c.0.s8 %v830
        %v832 = vlaneseq
        %v833 = vshrl.u32 %v832, 7
        %v834 = vsub.s32 %v831, %v833
        %v835 = vrot.slane %v807, %v834
        %v836 = vcombine.low %v814, %v821
        %v837 = vcombine.low %v828, %v835
        %v839 = vunpack.c.l.s4 1966171168
        %v840 = vunpack.c.0.s8 %v839
        %v841 = vlaneseq
        %v842 = vshrl.u32 %v841, 7
        %v843 = vsub.s32 %v840, %v842
        %v844 = vrot.slane %v836, %v843
        %v846 = vunpack.c.l.s4 1966171168
        %v847 = vunpack.c.0.s8 %v846
        %v848 = vlaneseq
        %v849 = vshrl.u32 %v848, 7
        %v850 = vsub.s32 %v847, %v849
        %v851 = vrot.slane %v837, %v850
        %v852 = vcombine.low %v844, %v851
        %v853 = vcombine.low %v694, %v698
        %v854 = vcombine.low %v702, %v706
        %v855 = vcombine.low %v710, %v714
        %v856 = vcombine.low %v718, %v722
        %v858 = vunpack.c.l.s4 1966171168
        %v859 = vunpack.c.0.s8 %v858
        %v860 = vlaneseq
        %v861 = vshrl.u32 %v860, 7
        %v862 = vsub.s32 %v859, %v861
        %v863 = vrot.slane %v853, %v862
        %v865 = vunpack.c.l.s4 1966171168
        %v866 = vunpack.c.0.s8 %v865
        %v867 = vlaneseq
        %v868 = vshrl.u32 %v867, 7
        %v869 = vsub.s32 %v866, %v868
        %v870 = vrot.slane %v854, %v869
        %v872 = vunpack.c.l.s4 1966171168
        %v873 = vunpack.c.0.s8 %v872
        %v874 = vlaneseq
        %v875 = vshrl.u32 %v874, 7
        %v876 = vsub.s32 %v873, %v875
        %v877 = vrot.slane %v855, %v876
        %v879 = vunpack.c.l.s4 1966171168
        %v880 = vunpack.c.0.s8 %v879
        %v881 = vlaneseq
        %v882 = vshrl.u32 %v881, 7
        %v883 = vsub.s32 %v880, %v882
        %v884 = vrot.slane %v856, %v883
        %v885 = vcombine.low %v863, %v870
        %v886 = vcombine.low %v877, %v884
        %v888 = vunpack.c.l.s4 1966171168
        %v889 = vunpack.c.0.s8 %v888
        %v890 = vlaneseq
        %v891 = vshrl.u32 %v890, 7
        %v892 = vsub.s32 %v889, %v891
        %v893 = vrot.slane %v885, %v892
        %v895 = vunpack.c.l.s4 1966171168
        %v896 = vunpack.c.0.s8 %v895
        %v897 = vlaneseq
        %v898 = vshrl.u32 %v897, 7
        %v899 = vsub.s32 %v896, %v898
        %v900 = vrot.slane %v886, %v899
        %v901 = vcombine.low %v893, %v900
        %v902 = vcombine.low %v726, %v730
        %v903 = vcombine.low %v734, %v738
        %v904 = vcombine.low %v742, %v746
        %v905 = vcombine.low %v750, %v754
        %v907 = vunpack.c.l.s4 1966171168
        %v908 = vunpack.c.0.s8 %v907
        %v909 = vlaneseq
        %v910 = vshrl.u32 %v909, 7
        %v911 = vsub.s32 %v908, %v910
        %v912 = vrot.slane %v902, %v911
        %v914 = vunpack.c.l.s4 1966171168
        %v915 = vunpack.c.0.s8 %v914
        %v916 = vlaneseq
        %v917 = vshrl.u32 %v916, 7
        %v918 = vsub.s32 %v915, %v917
        %v919 = vrot.slane %v903, %v918
        %v921 = vunpack.c.l.s4 1966171168
        %v922 = vunpack.c.0.s8 %v921
        %v923 = vlaneseq
        %v924 = vshrl.u32 %v923, 7
        %v925 = vsub.s32 %v922, %v924
        %v926 = vrot.slane %v904, %v925
        %v928 = vunpack.c.l.s4 1966171168
        %v929 = vunpack.c.0.s8 %v928
        %v930 = vlaneseq
        %v931 = vshrl.u32 %v930, 7
        %v932 = vsub.s32 %v929, %v931
        %v933 = vrot.slane %v905, %v932
        %v934 = vcombine.low %v912, %v919
        %v935 = vcombine.low %v926, %v933
        %v937 = vunpack.c.l.s4 1966171168
        %v938 = vunpack.c.0.s8 %v937
        %v939 = vlaneseq
        %v940 = vshrl.u32 %v939, 7
        %v941 = vsub.s32 %v938, %v940
        %v942 = vrot.slane %v934, %v941
        %v944 = vunpack.c.l.s4 1966171168
        %v945 = vunpack.c.0.s8 %v944
        %v946 = vlaneseq
        %v947 = vshrl.u32 %v946, 7
        %v948 = vsub.s32 %v945, %v947
        %v949 = vrot.slane %v935, %v948
        %v950 = vcombine.low %v942, %v949
        %951 = vset.pattern.permute.xlu0 0
        %952 = vperm.xlu0 %951, %v803
        %v953 = vpop.permute.xlu0 %952
        %954 = vset.pattern.permute.xlu0 0
        %955 = vperm.xlu0 %954, %v852
        %v956 = vpop.permute.xlu0 %955
        %957 = vset.pattern.permute.xlu0 0
        %958 = vperm.xlu0 %957, %v901
        %v959 = vpop.permute.xlu0 %958
        %960 = vset.pattern.permute.xlu0 0
        %961 = vperm.xlu0 %960, %v950
        %v962 = vpop.permute.xlu0 %961
        %v963 = vlaneseq
        %v964 = vshrl.u32 %v963, 7
        %v965 = vsub.s32 %v558, %v964
        %v966 = vrot.slane %v953, %v965
        %v967 = vlaneseq
        %v968 = vshrl.u32 %v967, 7
        %v969 = vsub.s32 %v563, %v968
        %v970 = vrot.slane %v956, %v969
        %v971 = vsel %vm568, %v970, %v966
        %v972 = vlaneseq
        %v973 = vshrl.u32 %v972, 7
        %v974 = vsub.s32 %v570, %v973
        %v975 = vrot.slane %v959, %v974
        %v976 = vsel %vm575, %v975, %v971
        %v977 = vlaneseq
        %v978 = vshrl.u32 %v977, 7
        %v979 = vsub.s32 %v577, %v978
        %v980 = vrot.slane %v962, %v979
        %v981 = vsel %vm582, %v980, %v976
        %v983 = vunpack.c.l.s4 1966171168
        %v984 = vunpack.c.0.s8 %v983
        %v985 = vlaneseq
        %v986 = vshrl.u32 %v985, 7
        %v987 = vsub.s32 %v984, %v986
        %v988 = vrot.slane %v981, %v987
        %v990 = vunpack.c.l.s4 1966171168
        %v991 = vunpack.c.0.s8 %v990
        %v992 = vlaneseq
        %v993 = vshrl.u32 %v992, 7
        %v994 = vsub.s32 %v991, %v993
        %v995 = vrot.slane %v988, %v994
        %v997 = vmax.f32 %v602, %v995
        %998 = vst.msk [vmem:[#allocation3] sm:$0x1] %vm600, %v997
        // Predicated region
        $region33: #{tpu_custom_call.1} parent=23 // pred_check
          %p999 = pneg %p173
        $region34: #{tpu_custom_call.1} parent=23 // pred_check_branch
          %1001 = sbr.rel (%p999) target = $region36
        $region35: #{tpu_custom_call.1} parent=23 // pred_region
          %v1002 = vld [vmem:[#allocation2] sm:$0x1]
          %v1003 = vld [vmem:[#allocation3] sm:$0x1]
          %v1005 = vlaneseq
          %v1006 = vshrl.u32 %v1005, 7
          %v1007 = vsub.s32 0, %v1006
          %v1008 = vrot.slane %v1003, %v1007
          %vm1010 = vcmask 1040384
          %v1011 = vsel %vm1010, %v1002, %v1008
          %vm1012 = vcmask 254976
          %1013 = vst.msk [vmem:[%s168] sm:$0x3] %vm1012, %v1011
        $region36: #{tpu_custom_call.1} parent=23 // pred_fallthru
          _
        %s1014 = sand.u32 %s81, 1
        %s1015 = scalar_lea.sflag [#allocation6], %s1014
        %s1016 = sand.u32 %s81, 1
        %s1017 = smul.addr %s1016, 2
        %s1018 = scalar_lea.vmem [#allocation7], %s1017
        // Predicated region
        $region37: #{tpu_custom_call.1} parent=23 // pred_check
          %p1019 = pneg %p91
        $region38: #{tpu_custom_call.1} parent=23 // pred_check_branch
          %1021 = sbr.rel (%p1019) target = $region40
        $region39: #{tpu_custom_call.1} parent=23 // pred_region
          %s1023 = ssub.s32 32, 32
          %1024 = vsyncadd %s1015, %s1023
          %s1025 = smul.addr %s23, 2
          %s1026 = sadd.s32 %s24, %s1025
          %s1027 = smul.addr %s1026, 32
          %s1028 = scalar_lea.hbm %s1, %s1027
          %s1030 = sshll.u32 %s1018, 4
          %s1031 = int_to_ptr.vmem [resolvable:$true] %s1030
          %1033 = dma.vmem_to_hbm [thread:$0]  %s1031, 32, %s1028, %s1015
        $region40: #{tpu_custom_call.1} parent=23 // pred_fallthru
          _
      $region24: #{tpu_custom_call.1} parent=5 // pred_fallthru
        _
      %p1034 = scmp.le.s32.totalorder 2, %s13
      // Predicated region
      $region41: #{tpu_custom_call.1} parent=5 // pred_check
        %p1035 = pneg %p1034
      $region42: #{tpu_custom_call.1} parent=5 // pred_check_branch
        %1037 = sbr.rel (%p1035) target = $region44
      $region43: #{tpu_custom_call.1} parent=5 // pred_region
        %s1038 = ssub.s32 %s13, 2
        // Predicated region
        $region45: #{tpu_custom_call.1} parent=43 // pred_check
          %p1039 = pneg %p97
        $region46: #{tpu_custom_call.1} parent=43 // pred_check_branch
          %1041 = sbr.rel (%p1039) target = $region48
        $region47: #{tpu_custom_call.1} parent=43 // pred_region
          %s1042 = sand.u32 %s82, 1
          %s1043 = scalar_lea.sflag [#allocation6], %s1042
          %s1044 = sand.u32 %s82, 1
          %s1045 = smul.addr %s1044, 2
          %s1046 = scalar_lea.vmem [#allocation7], %s1045
          %1047 = dma.done %s1043, 32
        $region48: #{tpu_custom_call.1} parent=43 // pred_fallthru
          _
      $region44: #{tpu_custom_call.1} parent=5 // pred_fallthru
        _
    $region6: #{tpu_custom_call.1} parent=1 // loop_footer
      %s17 = sadd.s32 1, %s13
    $region7: #{tpu_custom_call.1} parent=1 // loop_footer_branch
      %12 = sbr.rel target = $region3
    $region8: #{tpu_custom_call.1} parent=1 // loop_exit
      _
    %1048 = vsyncpa [#allocation5], 1
    %s1049 = scalar_lea.sflag [#allocation5], 1
    %1050 = vsyncpa %s1049, 1
    %1051 = vsyncpa [#allocation6], 1
    %s1052 = scalar_lea.sflag [#allocation6], 1
    %1053 = vsyncpa %s1052, 1

</llo_original>
